<compile_context>
chip_gen: v5e
topology: v5e:2x2
jax: 0.10.0
libtpu: 0.0.40
codegen_flags: <defaults>
</compile_context>

<pallas_src>
import jax
import jax.numpy as jnp
from jax.experimental import pallas as pl
from jax.experimental.pallas import tpu as pltpu

HIDDEN = 128              # fc1 width from the PyTorch module: nn.Linear(feature_size, 128)
NO_GRID_MAX_BATCH = 128   # at/below this, skip the grid & software pipeline entirely


def simple_model_kernel(x_ref, w1_ref, b1_ref, w2_ref, b2_ref, out_ref):
    # fc1 (MXU matmul, f32 accumulation) + bias + ReLU (VPU)
    h = jnp.dot(x_ref[...], w1_ref[...], preferred_element_type=jnp.float32) + b1_ref[...]
    h = jnp.maximum(h, 0.0)

    # fc2
    logits = jnp.dot(h, w2_ref[...], preferred_element_type=jnp.float32) + b2_ref[...]

    # Numerically stable log_softmax over the class axis (dim=1), all f32.
    # Padded rows of a partial last batch tile may produce Inf/NaN here, but the
    # reduction is strictly per-row and Pallas masks the writeback, so real rows are
    # unaffected.
    m = jnp.max(logits, axis=-1, keepdims=True)
    shifted = logits - m
    lse = jnp.log(jnp.sum(jnp.exp(shifted), axis=-1, keepdims=True))
    out_ref[...] = (shifted - lse).astype(out_ref.dtype)


def _round_up(x, m):
    return ((x + m - 1) // m) * m


def simple_model_forward(x, w1, b1, w2, b2, *, block_batch=4096):
    B, F = x.shape
    H = w1.shape[1]
    C = w2.shape[1]
    # Shape sanity (review: the hidden size baked into the specs must match the weights).
    assert w1.shape == (F, H), (w1.shape, (F, H))
    assert w2.shape == (H, C), (w2.shape, (H, C))
    assert b1.shape == (1, H), b1.shape
    assert b2.shape == (1, C), b2.shape
    assert block_batch > 0 and block_batch % 8 == 0

    if B <= NO_GRID_MAX_BATCH:
        # Micro batch: no grid -> no software-pipeline bookkeeping, no double buffering.
        # Every operand is a whole-array VMEM-resident block.
        return pl.pallas_call(
            simple_model_kernel,
            out_shape=jax.ShapeDtypeStruct((B, C), jnp.float32),
            in_specs=[pl.BlockSpec(memory_space=pltpu.MemorySpace.VMEM)] * 5,
            out_specs=pl.BlockSpec(memory_space=pltpu.MemorySpace.VMEM),
        )(x, w1, b1, w2, b2)

    # Batch-tiled path. Per-step pipeline overhead dwarfs the per-step DMA for this thin
    # model, so use the largest tile block_batch allows -- but never fewer than 2 grid
    # points, so the "parallel" batch axis can be sharded across v7x's 2 TensorCores.
    # 8-row alignment keeps the sublane tiling happy.
    tb = max(8, min(block_batch, _round_up(pl.cdiv(B, 2), 8)))
    grid = (pl.cdiv(B, tb),)
    return pl.pallas_call(
        simple_model_kernel,
        out_shape=jax.ShapeDtypeStruct((B, C), jnp.float32),
        grid=grid,
        in_specs=[
            pl.BlockSpec((tb, F), lambda i: (i, 0)),   # x: streamed over batch
            pl.BlockSpec((F, H), lambda i: (0, 0)),    # W1: VMEM-resident
            pl.BlockSpec((1, H), lambda i: (0, 0)),    # b1: VMEM-resident
            pl.BlockSpec((H, C), lambda i: (0, 0)),    # W2: VMEM-resident
            pl.BlockSpec((1, C), lambda i: (0, 0)),    # b2: VMEM-resident
        ],
        out_specs=pl.BlockSpec((tb, C), lambda i: (i, 0)),
        compiler_params=pltpu.CompilerParams(
            # Independent batch tiles -> shard across v7x's 2 TensorCores
            # (harmless no-op on single-TC v5e/v6e).
            dimension_semantics=("parallel",),
            # Explicit limit: v5e's scoped default is only 16 MiB; 32 MiB also leaves
            # headroom against v7x's 64 MiB physical VMEM even at block_batch=8192.
            vmem_limit_bytes=32 * 1024 * 1024,
        ),
    )(x, w1, b1, w2, b2)


def init_params(key, feature_size, num_classes):
    # kaiming_normal_ (fan_in, gain=sqrt(2)) for weights, zeros for biases — mirrors
    # BaseModel.init_weights for nn.Linear. Stored as (in, out).
    k1, k2 = jax.random.split(key)
    std1 = jnp.sqrt(2.0 / feature_size)
    std2 = jnp.sqrt(2.0 / HIDDEN)
    w1 = jax.random.normal(k1, (feature_size, HIDDEN), jnp.float32) * std1
    b1 = jnp.zeros((1, HIDDEN), jnp.float32)
    w2 = jax.random.normal(k2, (HIDDEN, num_classes), jnp.float32) * std2
    b2 = jnp.zeros((1, num_classes), jnp.float32)
    return w1, b1, w2, b2


def _reference(x, w1, b1, w2, b2):
    h = jnp.maximum(x @ w1 + b1, 0.0)
    logits = h @ w2 + b2
    return jax.nn.log_softmax(logits, axis=1)


if __name__ == "__main__":
    feature_size = 32
    num_classes = 16

    key = jax.random.PRNGKey(0)
    kx, kp = jax.random.split(key)
    w1, b1, w2, b2 = init_params(kp, feature_size, num_classes)

    # --- Small batch: grid-less, whole-array VMEM path ---
    x_small = jax.random.normal(kx, (8, feature_size), jnp.float32)
    out_small = jax.block_until_ready(simple_model_forward(x_small, w1, b1, w2, b2))
    ref_small = _reference(x_small, w1, b1, w2, b2)
    assert out_small.shape == (8, num_classes)
    assert jnp.allclose(out_small, ref_small, atol=1e-5, rtol=1e-5)

    # --- Mid batch: grid=(2,) "parallel" tiles, partial last tile (200 = 104 + 96) ---
    x_mid = jax.random.normal(kx, (200, feature_size), jnp.float32)
    out_mid = jax.block_until_ready(simple_model_forward(x_mid, w1, b1, w2, b2))
    ref_mid = _reference(x_mid, w1, b1, w2, b2)
    assert out_mid.shape == (200, num_classes)
    assert jnp.allclose(out_mid, ref_mid, atol=1e-5, rtol=1e-5)

    # --- Multi-step grid with VMEM-resident weights (small tile just to exercise it) ---
    x_big = jax.random.normal(kx, (256, feature_size), jnp.float32)
    out_big = jax.block_until_ready(
        simple_model_forward(x_big, w1, b1, w2, b2, block_batch=64))
    ref_big = _reference(x_big, w1, b1, w2, b2)
    assert out_big.shape == (256, num_classes)
    assert jnp.allclose(out_big, ref_big, atol=1e-5, rtol=1e-5)

    print("KERNEL_OK")
</pallas_src>

<mosaic_0001>
module attributes {stable_mosaic.version = 11 : i64} {
  func.func @simple_model_kernel(%arg0: memref<8x32xf32, #tpu.memory_space<vmem>>, %arg1: memref<32x128xf32, #tpu.memory_space<vmem>>, %arg2: memref<1x128xf32, #tpu.memory_space<vmem>>, %arg3: memref<128x16xf32, #tpu.memory_space<vmem>>, %arg4: memref<1x16xf32, #tpu.memory_space<vmem>>, %arg5: memref<8x16xf32, #tpu.memory_space<vmem>>) attributes {dimension_semantics = [], scalar_prefetch = 0 : i64, scratch_operands = 0 : i64, tpu.core_type = #tpu.core_type<tc>} {
    %c0 = arith.constant 0 : index
    %c0_0 = arith.constant 0 : index
    %0 = vector.load %arg0[%c0, %c0_0] : memref<8x32xf32, #tpu.memory_space<vmem>>, vector<8x32xf32>
    %c0_1 = arith.constant 0 : index
    %c0_2 = arith.constant 0 : index
    %1 = vector.load %arg1[%c0_1, %c0_2] : memref<32x128xf32, #tpu.memory_space<vmem>>, vector<32x128xf32>
    %cst = arith.constant dense<0.000000e+00> : vector<8x128xf32>
    %2 = tpu.matmul %0, %1, %cst {dimension_numbers = #tpu.dot_dimension_numbers<[1], [0], [0], [1], [0, 0, 1, 1], [], []>} : vector<8x32xf32>, vector<32x128xf32>, vector<8x128xf32> -> vector<8x128xf32>
    %c0_3 = arith.constant 0 : index
    %c0_4 = arith.constant 0 : index
    %3 = vector.load %arg2[%c0_3, %c0_4] : memref<1x128xf32, #tpu.memory_space<vmem>>, vector<1x128xf32>
    %4 = vector.broadcast %3 : vector<1x128xf32> to vector<8x128xf32>
    %5 = arith.addf %2, %4 : vector<8x128xf32>
    %cst_5 = arith.constant 0.000000e+00 : f32
    %6 = vector.broadcast %cst_5 : f32 to vector<8x128xf32>
    %7 = arith.maximumf %5, %6 : vector<8x128xf32>
    %c0_6 = arith.constant 0 : index
    %c0_7 = arith.constant 0 : index
    %8 = vector.load %arg3[%c0_6, %c0_7] : memref<128x16xf32, #tpu.memory_space<vmem>>, vector<128x16xf32>
    %cst_8 = arith.constant dense<0.000000e+00> : vector<8x16xf32>
    %9 = tpu.matmul %7, %8, %cst_8 {dimension_numbers = #tpu.dot_dimension_numbers<[1], [0], [0], [1], [0, 0, 1, 1], [], []>} : vector<8x128xf32>, vector<128x16xf32>, vector<8x16xf32> -> vector<8x16xf32>
    %c0_9 = arith.constant 0 : index
    %c0_10 = arith.constant 0 : index
    %10 = vector.load %arg4[%c0_9, %c0_10] : memref<1x16xf32, #tpu.memory_space<vmem>>, vector<1x16xf32>
    %11 = vector.broadcast %10 : vector<1x16xf32> to vector<8x16xf32>
    %12 = arith.addf %9, %11 : vector<8x16xf32>
    %cst_11 = arith.constant dense<0xFF800000> : vector<8xf32>
    %13 = vector.multi_reduction <maximumf>, %12, %cst_11 [1] : vector<8x16xf32> to vector<8xf32>
    %14 = vector.shape_cast %13 : vector<8xf32> to vector<8x1xf32>
    %15 = vector.broadcast %14 : vector<8x1xf32> to vector<8x16xf32>
    %16 = arith.subf %12, %15 : vector<8x16xf32>
    %17 = math.exp %16 : vector<8x16xf32>
    %cst_12 = arith.constant dense<0.000000e+00> : vector<8xf32>
    %18 = vector.multi_reduction <add>, %17, %cst_12 [1] : vector<8x16xf32> to vector<8xf32>
    %19 = vector.shape_cast %18 : vector<8xf32> to vector<8x1xf32>
    %20 = math.log %19 : vector<8x1xf32>
    %21 = vector.broadcast %20 : vector<8x1xf32> to vector<8x16xf32>
    %22 = arith.subf %16, %21 : vector<8x16xf32>
    %c0_13 = arith.constant 0 : index
    %c0_14 = arith.constant 0 : index
    %23 = vector.load %arg5[%c0_13, %c0_14] : memref<8x16xf32, #tpu.memory_space<vmem>>, vector<8x16xf32>
    tpu.vector_store %arg5[%c0_13, %c0_14], %22 {strides = array<i32>} : memref<8x16xf32, #tpu.memory_space<vmem>>, vector<8x16xf32>,
    return
  }
}

</mosaic_0001>

<llo_original>
// kernel: tpu_custom_call.1
$region0: #{tpu_custom_call.1}
  #allocation0 [shape = 'u32[]', space=smem, size = 0x4, offset = 0x4, fixed_abs, tag = 'smem constant byte address 0x4 - core index']
  #allocation1 [shape = 'u32[72,128]{1,0:T(1,128)}', space=vmem, size = 0x9000, scoped, tag = 'internal scratch']
  %s0 = inlined_call_operand.vmem [shape: f32[8,32], index: 0, kind: input, shape index: {}]
  %s1 = inlined_call_operand.vmem [shape: f32[32,128], index: 1, kind: input, shape index: {}]
  %s2 = inlined_call_operand.vmem [shape: f32[1,128], index: 2, kind: input, shape index: {}]
  %s3 = inlined_call_operand.vmem [shape: f32[128,16], index: 3, kind: input, shape index: {}]
  %s4 = inlined_call_operand.vmem [shape: f32[1,16], index: 4, kind: input, shape index: {}]
  %s5 = inlined_call_operand.hbm [shape: f32[8,16], index: 5, kind: output, shape index: {}]
  %s6 = sld [smem:[#allocation0]]
  $region30: #{tpu_custom_call.1} parent=0
    _
  %s8 = ssub.s32 1, %s6
  %s9 = scalar_select 0, %s8, %s6
  $region1: #{tpu_custom_call.1} parent=0
    #allocation2 [shape = 'u8[4096]{0}', space=vmem, size = 0x1000, scoped, tag = 'output window, operand 0, single buffered']
    #allocation3 [shape = 's32[1]{0}', space=sflag, size = 0x4, scoped, tag = 'scoped memory for tpu_custom_call.1']
    %10 = vsyncpa [#allocation3], 0
    // Predicated region
    $region2: #{tpu_custom_call.1} parent=1 // pred_check
      _
    $region3: #{tpu_custom_call.1} parent=1 // pred_check_branch
      %12 = sbr.rel (0) target = $region5
    $region4: #{tpu_custom_call.1} parent=1 // pred_region
      _
    $region5: #{tpu_custom_call.1} parent=1 // pred_fallthru
      _
    // Predicated region
    $region6: #{tpu_custom_call.1} parent=1 // pred_check
      _
    $region7: #{tpu_custom_call.1} parent=1 // pred_check_branch
      %14 = sbr.rel (0) target = $region9
    $region8: #{tpu_custom_call.1} parent=1 // pred_region
      _
    $region9: #{tpu_custom_call.1} parent=1 // pred_fallthru
      _
    // Predicated region
    $region10: #{tpu_custom_call.1} parent=1 // pred_check
      _
    $region11: #{tpu_custom_call.1} parent=1 // pred_check_branch
      %16 = sbr.rel (0) target = $region13
    $region12: #{tpu_custom_call.1} parent=1 // pred_region
      _
    $region13: #{tpu_custom_call.1} parent=1 // pred_fallthru
      _
    // Predicated region
    $region14: #{tpu_custom_call.1} parent=1 // pred_check
      _
    $region15: #{tpu_custom_call.1} parent=1 // pred_check_branch
      %18 = sbr.rel (0) target = $region17
    $region16: #{tpu_custom_call.1} parent=1 // pred_region
      _
    $region17: #{tpu_custom_call.1} parent=1 // pred_fallthru
      _
    // Predicated region
    $region18: #{tpu_custom_call.1} parent=1 // pred_check
      _
    $region19: #{tpu_custom_call.1} parent=1 // pred_check_branch
      %20 = sbr.rel (0) target = $region21
    $region20: #{tpu_custom_call.1} parent=1 // pred_region
      _
    $region21: #{tpu_custom_call.1} parent=1 // pred_fallthru
      _
    %v21 = vld [vmem:[%s0] sm:$0xff]
    %v22 = vld [vmem:[%s1] sm:$0xff]
    %v23 = vld [vmem:[%s1 + $0x8] sm:$0xff]
    %v24 = vld [vmem:[%s1 + $0x10] sm:$0xff]
    %v25 = vld [vmem:[%s1 + $0x18] sm:$0xff]
    %v26 = vld [vmem:[%s2] sm:$0x1]
    %v28 = vperm.slane %v26, 0
    %vm30 = vcmask 261120
    %v32 = vsel %vm30, %v21, 0
    %34 = vmatpush.msra.mxu0 0.0
    %35 = vmatpush.msra.mxu0 0.0
    %36 = vmatpush.msra.mxu0 0.0
    %37 = vmatpush.msra.mxu0 0.0
    %38 = vmatpush.msra.mxu0 0.0
    %39 = vmatpush.msra.mxu0 0.0
    %40 = vmatpush.msra.mxu0 0.0
    %41 = vmatpush.msra.mxu0 0.0
    %42 = vmatpush.msra.mxu0 0.0
    %43 = vmatpush.msra.mxu0 0.0
    %44 = vmatpush.msra.mxu0 0.0
    %45 = vmatpush.msra.mxu0 0.0
    %46 = vmatpush.msra.mxu0 %v25
    %47 = vmatpush.msra.mxu0 %v24
    %48 = vmatpush.msra.mxu0 %v23
    %49 = vmatpush.msra.mxu0 %v22
    %50 = vmatmul.f32.gmra.mxu0 %v32
    %v51 = vpop.f32.mrf.mxu0
    %v52 = vadd.f32 %v28, %v51
    %53 = vdwg.mxu0
    %v54 = vmax.f32 %v52, 0.0
    %v55 = vld [vmem:[%s3] sm:$0xff]
    %v56 = vld [vmem:[%s3 + $0x8] sm:$0xff]
    %v57 = vld [vmem:[%s3 + $0x10] sm:$0xff]
    %v58 = vld [vmem:[%s3 + $0x18] sm:$0xff]
    %v59 = vld [vmem:[%s3 + $0x20] sm:$0xff]
    %v60 = vld [vmem:[%s3 + $0x28] sm:$0xff]
    %v61 = vld [vmem:[%s3 + $0x30] sm:$0xff]
    %v62 = vld [vmem:[%s3 + $0x38] sm:$0xff]
    %v63 = vld [vmem:[%s3 + $0x40] sm:$0xff]
    %v64 = vld [vmem:[%s3 + $0x48] sm:$0xff]
    %v65 = vld [vmem:[%s3 + $0x50] sm:$0xff]
    %v66 = vld [vmem:[%s3 + $0x58] sm:$0xff]
    %v67 = vld [vmem:[%s3 + $0x60] sm:$0xff]
    %v68 = vld [vmem:[%s3 + $0x68] sm:$0xff]
    %v69 = vld [vmem:[%s3 + $0x70] sm:$0xff]
    %v70 = vld [vmem:[%s3 + $0x78] sm:$0xff]
    %v71 = vld [vmem:[%s4] sm:$0x1]
    %v73 = vperm.slane %v71, 0
    %75 = vmatpush.msra.mxu0 %v70
    %76 = vmatpush.msra.mxu0 %v69
    %77 = vmatpush.msra.mxu0 %v68
    %78 = vmatpush.msra.mxu0 %v67
    %79 = vmatpush.msra.mxu0 %v66
    %80 = vmatpush.msra.mxu0 %v65
    %81 = vmatpush.msra.mxu0 %v64
    %82 = vmatpush.msra.mxu0 %v63
    %83 = vmatpush.msra.mxu0 %v62
    %84 = vmatpush.msra.mxu0 %v61
    %85 = vmatpush.msra.mxu0 %v60
    %86 = vmatpush.msra.mxu0 %v59
    %87 = vmatpush.msra.mxu0 %v58
    %88 = vmatpush.msra.mxu0 %v57
    %89 = vmatpush.msra.mxu0 %v56
    %90 = vmatpush.msra.mxu0 %v55
    %91 = vmatmul.f32.gmra.mxu0 %v54
    %v92 = vpop.f32.mrf.mxu0
    %v93 = vadd.f32 %v73, %v92
    %94 = vdwg.mxu0
    %vm95 = vcmask 130048
    %v96 = vsel %vm95, %v93, -inf
    %97 = vmax.xlane.f32.xlu0 %v96
    %v98 = vpop.xlane.xlu0 %97
    %v99 = vsub.f32 %v93, %v98
    %v100 = vmul.f32 %v99, 1.442695
    %v101 = vpow.pop %v100
    %v102 = vsel %vm95, %v101, 0.0
    %103 = vadd.xlane.f32.xlu0 %v102
    %v104 = vpop.xlane.xlu0 %103
    %v105 = vlog2.pop %v104
    %v106 = vmul.f32 %v105, 0.6931472
    %v107 = vsub.f32 %v99, %v106
    %108 = vst.msk [vmem:[#allocation2] sm:$0xff] %vm95, %v107
    // Predicated region
    $region22: #{tpu_custom_call.1} parent=1 // pred_check
      _
    $region23: #{tpu_custom_call.1} parent=1 // pred_check_branch
      %110 = sbr.rel (0) target = $region25
    $region24: #{tpu_custom_call.1} parent=1 // pred_region
      %112 = vsyncadd [#allocation3], 0
      %s114 = sshll.u32 [#allocation2], 4
      %s115 = int_to_ptr.vmem [resolvable:$true] %s114
      %s116 = sshll.u32 %s5, 4
      %s117 = int_to_ptr.hbm [resolvable:$true] %s116
      %119 = dma.vmem_to_hbm [thread:$0]  %s115, 128, %s117, [#allocation3]
    $region25: #{tpu_custom_call.1} parent=1 // pred_fallthru
      _
    // Predicated region
    $region26: #{tpu_custom_call.1} parent=1 // pred_check
      _
    $region27: #{tpu_custom_call.1} parent=1 // pred_check_branch
      %121 = sbr.rel (0) target = $region29
    $region28: #{tpu_custom_call.1} parent=1 // pred_region
      %123 = dma.done [#allocation3], 128
    $region29: #{tpu_custom_call.1} parent=1 // pred_fallthru
      _
    %124 = vsyncpa [#allocation3], 1

</llo_original>
